<compile_context>
chip_gen: v7x
topology: tpu7x:2x2x1
jax: 0.10.0
libtpu: 0.0.40
codegen_flags: <defaults>
</compile_context>

<pallas_src>
import functools
import math
from typing import NamedTuple

import jax
import jax.numpy as jnp
from jax import lax
from jax.experimental import pallas as pl
from jax.experimental.pallas import tpu as pltpu

_MIB = 1024 * 1024


def _round_up(x, m):
    return ((x + m - 1) // m) * m


class PreparedParams(NamedTuple):
    """Kernel-ready parameters (padded / transposed / optionally bf16-cast)."""
    w1: jax.Array      # (2F, Hp)
    b1: jax.Array      # (1, Hp)   f32
    w2: jax.Array      # (Hp, H2p)
    b2: jax.Array      # (1, H2p)  f32
    w3_row: jax.Array  # (1, H2p)  final weight as a lane-dense row (w3.T)
    b3: jax.Array      # (1,)      f32 scalar (lives in SMEM)


def prepare_params(params, *, use_bf16=False):
    """One-time parameter prep (hoisted out of the per-call path).

    Zero-pads hidden widths to 128-lane multiples (numerically exact: padded
    weights/biases are zero and ReLU(0) == 0) and pre-transposes the width-1
    output layer into a (1, H2p) row.  With use_bf16=True the weight matrices
    are cast to bf16 ONCE here; x is cast inside the kernel (never in the
    wrapper) and accumulation stays f32 -> expect ~1e-2 relative error vs the
    f32 reference in that mode.  On v5e only use bf16 if the producer already
    emits bf16 samples (the win is MXU-side, not bandwidth-side, here).
    """
    w1, b1, w2, b2, w3, b3 = params
    H, H2 = w1.shape[1], w2.shape[1]
    Hp, H2p = _round_up(H, 128), _round_up(H2, 128)
    if Hp != H or H2p != H2:
        w1 = jnp.pad(w1, ((0, 0), (0, Hp - H)))
        b1 = jnp.pad(b1, ((0, 0), (0, Hp - H)))
        w2 = jnp.pad(w2, ((0, Hp - H), (0, H2p - H2)))
        b2 = jnp.pad(b2, ((0, 0), (0, H2p - H2)))
        w3 = jnp.pad(w3, ((0, H2p - H2), (0, 0)))
    w3_row = w3.T
    if use_bf16:
        w1 = w1.astype(jnp.bfloat16)
        w2 = w2.astype(jnp.bfloat16)
        w3_row = w3_row.astype(jnp.bfloat16)
    return PreparedParams(w1=w1, b1=b1.astype(jnp.float32),
                          w2=w2, b2=b2.astype(jnp.float32),
                          w3_row=w3_row,
                          b3=b3.reshape(-1).astype(jnp.float32))


def _mlp_kernel(valid_rows, x_ref, w1_ref, b1_ref, w2_ref, b2_ref, w3_ref,
                b3_ref, o_ref):
    # Operand dtype follows the (possibly bf16) weights; accumulation is f32.
    x = x_ref[...].astype(w1_ref.dtype)                               # (TB, 2F)
    h1 = jnp.dot(x, w1_ref[...], preferred_element_type=jnp.float32) + b1_ref[...]
    h1 = jnp.maximum(h1, 0.0)                                         # (TB, Hp)
    h2 = jnp.dot(h1.astype(w2_ref.dtype), w2_ref[...],
                 preferred_element_type=jnp.float32) + b2_ref[...]
    h2 = jnp.maximum(h2, 0.0)                                         # (TB, H2p)
    # Width-1 output layer: contract the (1, H2p) weight row against h2 over the
    # last dim of both operands (== pl.dot(w3, h2, trans_b=True)) so the result
    # is a lane-dense (1, TB) row instead of a masked 1-lane-wide column.
    out_row = lax.dot_general(
        w3_ref[...], h2.astype(w3_ref.dtype),
        dimension_numbers=(((1,), (1,)), ((), ())),
        preferred_element_type=jnp.float32)                           # (1, TB)
    out_row = out_row + b3_ref[0]
    # Deterministic zero tail: rows past the valid batch in a ragged final tile
    # carry implementation-defined garbage; mask them (nearly free: ~tb/128
    # vregs of VPU work) so stored values never depend on stale VMEM contents.
    tb = o_ref.shape[1]
    col = lax.broadcasted_iota(jnp.int32, (1, tb), 1)
    remaining = valid_rows - pl.program_id(0) * tb
    out_row = jnp.where(col < remaining, out_row, 0.0)
    o_ref[...] = out_row.astype(o_ref.dtype)


def _vmem_budget_bytes():
    """Generation-aware VMEM budget with ~25% headroom for Mosaic scratch."""
    cap = None
    try:
        cap = int(getattr(pltpu.get_tpu_info(), "vmem_capacity_bytes", 0)) or None
    except Exception:
        cap = None
    if cap is None:
        cap = 64 * _MIB          # conservative fallback: v7x per-TensorCore VMEM
    return (cap * 3) // 4        # ~96 MiB on v5e/v6e, ~48 MiB on v7x


def _choose_tiling(batch, tb_max):
    """Pick (tile_b, num_tiles): lane-dense 128-multiples; even tile count when
    the batch spans multiple tiles (keeps both v7x TensorCores busy)."""
    if batch <= tb_max:
        return _round_up(max(batch, 1), 128), 1
    nt = pl.cdiv(batch, tb_max)
    nt += nt % 2                                   # even tile count for megacore
    tb = _round_up(pl.cdiv(batch, nt), 128)
    nt = pl.cdiv(batch, tb)
    if nt > 1 and nt % 2:                          # 128-rounding collapsed a tile
        tb = _round_up(pl.cdiv(batch, nt + 1), 128)
        nt = pl.cdiv(batch, tb)
    return tb, nt


def ted_classifier_forward(samples, params, *, tile_b=None):
    """samples: (B, 2, F) -> (B, 1) float32 (eval-mode forward).

    `params` is either a PreparedParams (preferred: prepare once, reuse every
    call) or the raw (w1, b1, w2, b2, w3, b3) tuple from init_params.
    """
    if not isinstance(params, PreparedParams):
        params = prepare_params(params)
    w1, b1, w2, b2, w3_row, b3 = params

    B, two, F = samples.shape
    assert two == 2
    in_features = 2 * F
    assert w1.shape[0] == in_features
    Hp, H2p = w1.shape[1], w2.shape[1]

    # (B, 2, F) row-major is already contiguous as (B, 2F): a reshape is exactly
    # torch.cat([x1, x2], dim=1) without materializing a second copy of x.
    x = samples.reshape(B, in_features)
    x_itemsize = x.dtype.itemsize

    # ---- batch tile from a real VMEM budget (not a hard 512 cap) -----------
    weight_bytes = sum(int(a.size) * a.dtype.itemsize
                       for a in (w1, b1, w2, b2, w3_row))
    budget = _vmem_budget_bytes()
    per_row = (2 * in_features * x_itemsize            # double-buffered x tile
               + (Hp + H2p + in_features) * 4          # live f32 h1/h2 (+ x cast)
               + 2 * 4)                                # double-buffered out row
    fixed = 2 * weight_bytes + 2 * _MIB                # weight buffers + slack
    rows = max(0, budget - fixed) // per_row
    tb_max = max(256, min(8192, (rows // 128) * 128))

    if tile_b is not None:
        tb = _round_up(int(tile_b), 128)
        num_tiles = pl.cdiv(B, tb)
    else:
        tb, num_tiles = _choose_tiling(B, tb_max)
    padded_rows = num_tiles * tb

    # Single-tile small batches: pad x up to the tile (trivial cost) so there is
    # no partial block at all.  Multi-tile ragged batches keep a partial final
    # block (standard Pallas edge-block semantics; no extra HBM pass over x);
    # the kernel zero-masks the corresponding output tail.
    if num_tiles == 1 and padded_rows != B:
        x = jnp.pad(x, ((0, padded_rows - B), (0, 0)))

    est_vmem = (2 * tb * in_features * x_itemsize
                + tb * (Hp + H2p + in_features) * 4
                + 2 * tb * 4
                + 2 * weight_bytes)
    vmem_limit = int(min(budget, max(32 * _MIB, (est_vmem * 5) // 4)))

    cost = pl.CostEstimate(
        flops=2 * padded_rows * (in_features * Hp + Hp * H2p + H2p),
        transcendentals=0,
        bytes_accessed=int(B * in_features * x_itemsize + B * 4 + weight_bytes),
    )

    full2d = lambda i: (0, 0)
    # NOTE: x is the only streaming operand; if profiling ever shows exposed DMA
    # waits at tile boundaries, add pipeline_mode=pl.Buffered(3) to its spec.
    out = pl.pallas_call(
        functools.partial(_mlp_kernel, B),
        out_shape=jax.ShapeDtypeStruct((1, padded_rows), jnp.float32),
        grid_spec=pltpu.PrefetchScalarGridSpec(
            num_scalar_prefetch=0,
            grid=(num_tiles,),
            in_specs=[
                pl.BlockSpec((tb, in_features), lambda i: (i, 0)),   # x tile
                pl.BlockSpec(w1.shape, full2d),                      # W1 (2F, Hp)
                pl.BlockSpec(b1.shape, full2d),                      # b1 (1, Hp)
                pl.BlockSpec(w2.shape, full2d),                      # W2 (Hp, H2p)
                pl.BlockSpec(b2.shape, full2d),                      # b2 (1, H2p)
                pl.BlockSpec(w3_row.shape, full2d),                  # W3^T (1, H2p)
                pl.BlockSpec(memory_space=pltpu.MemorySpace.SMEM),   # b3 scalar
            ],
            out_specs=pl.BlockSpec((1, tb), lambda i: (0, i)),       # lane-dense
        ),
        compiler_params=pltpu.CompilerParams(
            dimension_semantics=("parallel",),
            vmem_limit_bytes=vmem_limit,
        ),
        cost_estimate=cost,
    )(x, w1, b1, w2, b2, w3_row, b3)

    return out[0, :B].reshape(B, 1)


def init_params(key, feature_dim):
    """Xavier-uniform weights, zero biases (matches the module's __init__)."""
    hidden = min(feature_dim, 256)
    dims = [(2 * feature_dim, hidden), (hidden, hidden // 2), (hidden // 2, 1)]
    params = []
    for (fan_in, fan_out) in dims:
        key, sub = jax.random.split(key)
        bound = math.sqrt(6.0 / (fan_in + fan_out))
        # stored as (in, out) so the kernel computes x @ W
        w = jax.random.uniform(sub, (fan_in, fan_out), jnp.float32, -bound, bound)
        b = jnp.zeros((1, fan_out), jnp.float32)
        params += [w, b]
    return tuple(params)


def reference_forward(samples, params):
    """Pure-JAX reference, written with explicit concat (validates the reshape)."""
    w1, b1, w2, b2, w3, b3 = params
    x = jnp.concatenate([samples[:, 0], samples[:, 1]], axis=1)
    h1 = jnp.maximum(x @ w1 + b1, 0.0)
    h2 = jnp.maximum(h1 @ w2 + b2, 0.0)
    return h2 @ w3 + b3


if __name__ == "__main__":
    key = jax.random.PRNGKey(0)
    k_param, k_x1, k_x2 = jax.random.split(key, 3)

    feature_dim = 32          # hidden = min(32, 256) = 32, hidden // 2 = 16
    raw_params = init_params(k_param, feature_dim)
    params = prepare_params(raw_params)              # one-time prep (hoisted)

    # Small single-tile case (tb rounded up to 128, x padded in the wrapper).
    samples = jax.random.normal(k_x1, (8, 2, feature_dim), jnp.float32)
    out = jax.block_until_ready(ted_classifier_forward(samples, params))
    ref = reference_forward(samples, raw_params)
    assert out.shape == (8, 1), out.shape
    assert jnp.allclose(out, ref, atol=1e-4, rtol=1e-4), (
        f"max abs err {jnp.max(jnp.abs(out - ref))}")

    # Multi-tile (pipelined) case with a ragged, zero-masked final tile.
    samples2 = jax.random.normal(k_x2, (300, 2, feature_dim), jnp.float32)
    out2 = jax.block_until_ready(
        ted_classifier_forward(samples2, params, tile_b=128))
    ref2 = reference_forward(samples2, raw_params)
    assert out2.shape == (300, 1), out2.shape
    assert jnp.allclose(out2, ref2, atol=1e-4, rtol=1e-4), (
        f"max abs err {jnp.max(jnp.abs(out2 - ref2))}")

    # bf16-operand path: weights cast once in prepare_params, x cast in-kernel
    # (no extra wrapper pass over x); f32 accumulation, relaxed tolerance.
    params_bf16 = prepare_params(raw_params, use_bf16=True)
    out3 = jax.block_until_ready(ted_classifier_forward(samples2, params_bf16))
    assert out3.shape == (300, 1), out3.shape
    assert jnp.allclose(out3, ref2, atol=5e-2, rtol=5e-2), (
        f"bf16 max abs err {jnp.max(jnp.abs(out3 - ref2))}")

    print("KERNEL_OK")
</pallas_src>

<mosaic_0001>
module attributes {stable_mosaic.version = 11 : i64} {
  func.func @_mlp_kernel(%arg0: i32, %arg1: memref<128x64xf32, #tpu.memory_space<vmem>>, %arg2: memref<64x128xf32, #tpu.memory_space<vmem>>, %arg3: memref<1x128xf32, #tpu.memory_space<vmem>>, %arg4: memref<128x128xf32, #tpu.memory_space<vmem>>, %arg5: memref<1x128xf32, #tpu.memory_space<vmem>>, %arg6: memref<1x128xf32, #tpu.memory_space<vmem>>, %arg7: memref<1xf32, #tpu.memory_space<smem>>, %arg8: memref<1x128xf32, #tpu.memory_space<vmem>>) attributes {dimension_semantics = [#tpu.dimension_semantics<parallel>], iteration_bounds = array<i64: 1>, scalar_prefetch = 0 : i64, scratch_operands = 0 : i64, tpu.core_type = #tpu.core_type<tc>, window_params = [{transform_indices = @transform_0, window_bounds = array<i64: 128, 64>}, {pipeline_mode = #tpu.pipeline_mode<synchronous>, transform_indices = @transform_1, window_bounds = array<i64: 64, 128>}, {pipeline_mode = #tpu.pipeline_mode<synchronous>, transform_indices = @transform_2, window_bounds = array<i64: 1, 128>}, {pipeline_mode = #tpu.pipeline_mode<synchronous>, transform_indices = @transform_3, window_bounds = array<i64: 128, 128>}, {pipeline_mode = #tpu.pipeline_mode<synchronous>, transform_indices = @transform_4, window_bounds = array<i64: 1, 128>}, {pipeline_mode = #tpu.pipeline_mode<synchronous>, transform_indices = @transform_5, window_bounds = array<i64: 1, 128>}, {transform_indices = @transform_6, window_bounds = array<i64: 1>}, {transform_indices = @transform_7, window_bounds = array<i64: 1, 128>}]} {
    %c0 = arith.constant 0 : index
    %c0_0 = arith.constant 0 : index
    %0 = vector.load %arg1[%c0, %c0_0] : memref<128x64xf32, #tpu.memory_space<vmem>>, vector<128x64xf32>
    %c0_1 = arith.constant 0 : index
    %c0_2 = arith.constant 0 : index
    %1 = vector.load %arg2[%c0_1, %c0_2] : memref<64x128xf32, #tpu.memory_space<vmem>>, vector<64x128xf32>
    %cst = arith.constant dense<0.000000e+00> : vector<128x128xf32>
    %2 = tpu.matmul %0, %1, %cst {dimension_numbers = #tpu.dot_dimension_numbers<[1], [0], [0], [1], [0, 0, 1, 1], [], []>} : vector<128x64xf32>, vector<64x128xf32>, vector<128x128xf32> -> vector<128x128xf32>
    %c0_3 = arith.constant 0 : index
    %c0_4 = arith.constant 0 : index
    %3 = vector.load %arg3[%c0_3, %c0_4] : memref<1x128xf32, #tpu.memory_space<vmem>>, vector<1x128xf32>
    %4 = vector.broadcast %3 : vector<1x128xf32> to vector<128x128xf32>
    %5 = arith.addf %2, %4 : vector<128x128xf32>
    %cst_5 = arith.constant 0.000000e+00 : f32
    %6 = vector.broadcast %cst_5 : f32 to vector<128x128xf32>
    %7 = arith.maximumf %5, %6 : vector<128x128xf32>
    %c0_6 = arith.constant 0 : index
    %c0_7 = arith.constant 0 : index
    %8 = vector.load %arg4[%c0_6, %c0_7] : memref<128x128xf32, #tpu.memory_space<vmem>>, vector<128x128xf32>
    %cst_8 = arith.constant dense<0.000000e+00> : vector<128x128xf32>
    %9 = tpu.matmul %7, %8, %cst_8 {dimension_numbers = #tpu.dot_dimension_numbers<[1], [0], [0], [1], [0, 0, 1, 1], [], []>} : vector<128x128xf32>, vector<128x128xf32>, vector<128x128xf32> -> vector<128x128xf32>
    %c0_9 = arith.constant 0 : index
    %c0_10 = arith.constant 0 : index
    %10 = vector.load %arg5[%c0_9, %c0_10] : memref<1x128xf32, #tpu.memory_space<vmem>>, vector<1x128xf32>
    %11 = vector.broadcast %10 : vector<1x128xf32> to vector<128x128xf32>
    %12 = arith.addf %9, %11 : vector<128x128xf32>
    %cst_11 = arith.constant 0.000000e+00 : f32
    %13 = vector.broadcast %cst_11 : f32 to vector<128x128xf32>
    %14 = arith.maximumf %12, %13 : vector<128x128xf32>
    %c0_12 = arith.constant 0 : index
    %c0_13 = arith.constant 0 : index
    %15 = vector.load %arg6[%c0_12, %c0_13] : memref<1x128xf32, #tpu.memory_space<vmem>>, vector<1x128xf32>
    %cst_14 = arith.constant dense<0.000000e+00> : vector<1x128xf32>
    %16 = tpu.matmul %15, %14, %cst_14 {dimension_numbers = #tpu.dot_dimension_numbers<[1], [1], [0], [0], [0, 0, 1, 0], [], []>} : vector<1x128xf32>, vector<128x128xf32>, vector<1x128xf32> -> vector<1x128xf32>
    %c0_15 = arith.constant 0 : index
    %17 = memref.load %arg7[%c0_15] : memref<1xf32, #tpu.memory_space<smem>>
    %18 = vector.broadcast %17 : f32 to vector<1x128xf32>
    %19 = arith.addf %16, %18 : vector<1x128xf32>
    %20 = tpu.iota {dimensions = array<i32: 1>} : vector<1x128xi32>
    %c128_i32 = arith.constant 128 : i32
    %21 = arith.muli %arg0, %c128_i32 : i32
    %c8_i32 = arith.constant 8 : i32
    %22 = arith.subi %c8_i32, %21 : i32
    %23 = vector.broadcast %22 : i32 to vector<1x128xi32>
    %24 = arith.cmpi slt, %20, %23 : vector<1x128xi32>
    %cst_16 = arith.constant 0.000000e+00 : f32
    %25 = vector.broadcast %cst_16 : f32 to vector<1x128xf32>
    %26 = arith.select %24, %19, %25 : vector<1x128xi1>, vector<1x128xf32>
    %c0_17 = arith.constant 0 : index
    %c0_18 = arith.constant 0 : index
    %27 = vector.load %arg8[%c0_17, %c0_18] : memref<1x128xf32, #tpu.memory_space<vmem>>, vector<1x128xf32>
    tpu.vector_store %arg8[%c0_17, %c0_18], %26 {strides = array<i32>} : memref<1x128xf32, #tpu.memory_space<vmem>>, vector<1x128xf32>,
    return
  }
  func.func @transform_0(%arg0: i32) -> (i32, i32) {
    %c0_i32 = arith.constant 0 : i32
    %c0_i32_0 = arith.constant 0 : i32
    return %arg0, %c0_i32 : i32, i32
  }
  func.func @transform_1(%arg0: i32) -> (i32, i32) {
    %c0_i32 = arith.constant 0 : i32
    %c0_i32_0 = arith.constant 0 : i32
    %c0_i32_1 = arith.constant 0 : i32
    return %c0_i32, %c0_i32_0 : i32, i32
  }
  func.func @transform_2(%arg0: i32) -> (i32, i32) {
    %c0_i32 = arith.constant 0 : i32
    %c0_i32_0 = arith.constant 0 : i32
    %c0_i32_1 = arith.constant 0 : i32
    return %c0_i32, %c0_i32_0 : i32, i32
  }
  func.func @transform_3(%arg0: i32) -> (i32, i32) {
    %c0_i32 = arith.constant 0 : i32
    %c0_i32_0 = arith.constant 0 : i32
    %c0_i32_1 = arith.constant 0 : i32
    return %c0_i32, %c0_i32_0 : i32, i32
  }
  func.func @transform_4(%arg0: i32) -> (i32, i32) {
    %c0_i32 = arith.constant 0 : i32
    %c0_i32_0 = arith.constant 0 : i32
    %c0_i32_1 = arith.constant 0 : i32
    return %c0_i32, %c0_i32_0 : i32, i32
  }
  func.func @transform_5(%arg0: i32) -> (i32, i32) {
    %c0_i32 = arith.constant 0 : i32
    %c0_i32_0 = arith.constant 0 : i32
    %c0_i32_1 = arith.constant 0 : i32
    return %c0_i32, %c0_i32_0 : i32, i32
  }
  func.func @transform_6(%arg0: i32) -> i32 {
    %c0_i32 = arith.constant 0 : i32
    %c0_i32_0 = arith.constant 0 : i32
    return %c0_i32 : i32
  }
  func.func @transform_7(%arg0: i32) -> (i32, i32) {
    %c0_i32 = arith.constant 0 : i32
    %c0_i32_0 = arith.constant 0 : i32
    return %c0_i32, %arg0 : i32, i32
  }
}

</mosaic_0001>

<llo_original>
// kernel: tpu_custom_call.1
$region0: #{tpu_custom_call.1}
  #allocation0 [shape = 'u32[]', space=smem, size = 0x4, offset = 0x4, fixed_abs, tag = 'smem constant byte address 0x4 - core index']
  #allocation1 [shape = 'u32[144,128]{1,0:T(1,128)}', space=vmem, size = 0x12000, scoped, tag = 'internal scratch']
  #allocation2 [shape = 'f32[1]{0:T(128)S(6)}', space=smem, size = 0x200, scoped, tag = 'scoped memory for tpu_custom_call.1']
  %s0 = inlined_call_operand.vmem [shape: f32[128,64], index: 0, kind: input, shape index: {}]
  %s1 = inlined_call_operand.vmem [shape: f32[64,128], index: 1, kind: input, shape index: {}]
  %s2 = inlined_call_operand.vmem [shape: f32[1,128], index: 2, kind: input, shape index: {}]
  %s3 = inlined_call_operand.vmem [shape: f32[128,128], index: 3, kind: input, shape index: {}]
  %s4 = inlined_call_operand.vmem [shape: f32[1,128], index: 4, kind: input, shape index: {}]
  %s5 = inlined_call_operand.vmem [shape: f32[1,128], index: 5, kind: input, shape index: {}]
  %s6 = inlined_call_operand.<no memory space> [shape: f32[1], index: 6, kind: input, shape index: {}]
  %s7 = inlined_call_operand.hbm [shape: f32[1,128], index: 7, kind: output, shape index: {}]
  %s8 = sld [smem:[#allocation0]]
  $region38: #{tpu_custom_call.1} parent=0
    _
  %s10 = ssub.s32 1, %s8
  %s11 = scalar_select 0, %s10, %s8
  %12 = sst [smem:[#allocation2]] %s6
  $region1: #{tpu_custom_call.1} parent=0
    #allocation3 [shape = 'u8[512]{0}', space=vmem, size = 0x400, scoped, tag = 'output window, operand 0, single buffered']
    #allocation4 [shape = 's32[1]{0}', space=sflag, size = 0x4, scoped, tag = 'scoped memory for tpu_custom_call.1']
    %13 = vsyncpa [#allocation4], 0
    // Predicated region
    $region2: #{tpu_custom_call.1} parent=1 // pred_check
      _
    $region3: #{tpu_custom_call.1} parent=1 // pred_check_branch
      %15 = sbr.rel (0) target = $region5
    $region4: #{tpu_custom_call.1} parent=1 // pred_region
      _
    $region5: #{tpu_custom_call.1} parent=1 // pred_fallthru
      _
    // Predicated region
    $region6: #{tpu_custom_call.1} parent=1 // pred_check
      _
    $region7: #{tpu_custom_call.1} parent=1 // pred_check_branch
      %17 = sbr.rel (0) target = $region9
    $region8: #{tpu_custom_call.1} parent=1 // pred_region
      _
    $region9: #{tpu_custom_call.1} parent=1 // pred_fallthru
      _
    // Predicated region
    $region10: #{tpu_custom_call.1} parent=1 // pred_check
      _
    $region11: #{tpu_custom_call.1} parent=1 // pred_check_branch
      %19 = sbr.rel (0) target = $region13
    $region12: #{tpu_custom_call.1} parent=1 // pred_region
      _
    $region13: #{tpu_custom_call.1} parent=1 // pred_fallthru
      _
    // Predicated region
    $region14: #{tpu_custom_call.1} parent=1 // pred_check
      _
    $region15: #{tpu_custom_call.1} parent=1 // pred_check_branch
      %21 = sbr.rel (0) target = $region17
    $region16: #{tpu_custom_call.1} parent=1 // pred_region
      _
    $region17: #{tpu_custom_call.1} parent=1 // pred_fallthru
      _
    // Predicated region
    $region18: #{tpu_custom_call.1} parent=1 // pred_check
      _
    $region19: #{tpu_custom_call.1} parent=1 // pred_check_branch
      %23 = sbr.rel (0) target = $region21
    $region20: #{tpu_custom_call.1} parent=1 // pred_region
      _
    $region21: #{tpu_custom_call.1} parent=1 // pred_fallthru
      _
    // Predicated region
    $region22: #{tpu_custom_call.1} parent=1 // pred_check
      _
    $region23: #{tpu_custom_call.1} parent=1 // pred_check_branch
      %25 = sbr.rel (0) target = $region25
    $region24: #{tpu_custom_call.1} parent=1 // pred_region
      _
    $region25: #{tpu_custom_call.1} parent=1 // pred_fallthru
      _
    // Predicated region
    $region26: #{tpu_custom_call.1} parent=1 // pred_check
      _
    $region27: #{tpu_custom_call.1} parent=1 // pred_check_branch
      %27 = sbr.rel (0) target = $region29
    $region28: #{tpu_custom_call.1} parent=1 // pred_region
      _
    $region29: #{tpu_custom_call.1} parent=1 // pred_fallthru
      _
    %v28 = vld [vmem:[%s0] sm:$0xff]
    %v29 = vld [vmem:[%s0 + $0x8] sm:$0xff]
    %v30 = vld [vmem:[%s0 + $0x10] sm:$0xff]
    %v31 = vld [vmem:[%s0 + $0x18] sm:$0xff]
    %v32 = vld [vmem:[%s0 + $0x20] sm:$0xff]
    %v33 = vld [vmem:[%s0 + $0x28] sm:$0xff]
    %v34 = vld [vmem:[%s0 + $0x30] sm:$0xff]
    %v35 = vld [vmem:[%s0 + $0x38] sm:$0xff]
    %v36 = vld [vmem:[%s0 + $0x40] sm:$0xff]
    %v37 = vld [vmem:[%s0 + $0x48] sm:$0xff]
    %v38 = vld [vmem:[%s0 + $0x50] sm:$0xff]
    %v39 = vld [vmem:[%s0 + $0x58] sm:$0xff]
    %v40 = vld [vmem:[%s0 + $0x60] sm:$0xff]
    %v41 = vld [vmem:[%s0 + $0x68] sm:$0xff]
    %v42 = vld [vmem:[%s0 + $0x70] sm:$0xff]
    %v43 = vld [vmem:[%s0 + $0x78] sm:$0xff]
    %v44 = vld [vmem:[%s1] sm:$0xff]
    %v45 = vld [vmem:[%s1 + $0x8] sm:$0xff]
    %v46 = vld [vmem:[%s1 + $0x10] sm:$0xff]
    %v47 = vld [vmem:[%s1 + $0x18] sm:$0xff]
    %v48 = vld [vmem:[%s1 + $0x20] sm:$0xff]
    %v49 = vld [vmem:[%s1 + $0x28] sm:$0xff]
    %v50 = vld [vmem:[%s1 + $0x30] sm:$0xff]
    %v51 = vld [vmem:[%s1 + $0x38] sm:$0xff]
    %v52 = vld [vmem:[%s2] sm:$0x1]
    %v54 = vlaneseq
    %v55 = vshrl.u32 %v54, 7
    %v56 = vsub.s32 0, %v55
    %v57 = vrot.slane %v52, %v56
    %vm59 = vcmask 523264
    %v61 = vsel %vm59, %v28, 0
    %v64 = vsel %vm59, %v29, 0
    %v67 = vsel %vm59, %v30, 0
    %v70 = vsel %vm59, %v31, 0
    %v73 = vsel %vm59, %v32, 0
    %v76 = vsel %vm59, %v33, 0
    %v79 = vsel %vm59, %v34, 0
    %v82 = vsel %vm59, %v35, 0
    %v85 = vsel %vm59, %v36, 0
    %v88 = vsel %vm59, %v37, 0
    %v91 = vsel %vm59, %v38, 0
    %v94 = vsel %vm59, %v39, 0
    %v97 = vsel %vm59, %v40, 0
    %v100 = vsel %vm59, %v41, 0
    %v103 = vsel %vm59, %v42, 0
    %v106 = vsel %vm59, %v43, 0
    %108 = vmatprep.subr.mxu0 0.0
    %109 = vmatpush1.msra.mxu0 %v44
    %110 = vmatprep.subr.mxu0 0.0
    %111 = vmatpush1.msra.mxu0 %v45
    %112 = vmatprep.subr.mxu0 0.0
    %113 = vmatpush1.msra.mxu0 %v46
    %114 = vmatprep.subr.mxu0 0.0
    %115 = vmatpush1.msra.mxu0 %v47
    %116 = vmatprep.subr.mxu0 0.0
    %117 = vmatpush1.msra.mxu0 %v48
    %118 = vmatprep.subr.mxu0 0.0
    %119 = vmatpush1.msra.mxu0 %v49
    %120 = vmatprep.subr.mxu0 0.0
    %121 = vmatpush1.msra.mxu0 %v50
    %122 = vmatprep.subr.mxu0 0.0
    %123 = vmatpush1.msra.mxu0 %v51
    %124 = vmatprep.subr.mxu0 0.0
    %125 = vmatpush1.msra.mxu0 0.0
    %126 = vmatprep.subr.mxu0 0.0
    %127 = vmatpush1.msra.mxu0 0.0
    %128 = vmatprep.subr.mxu0 0.0
    %129 = vmatpush1.msra.mxu0 0.0
    %130 = vmatprep.subr.mxu0 0.0
    %131 = vmatpush1.msra.mxu0 0.0
    %132 = vmatprep.subr.mxu0 0.0
    %133 = vmatpush1.msra.mxu0 0.0
    %134 = vmatprep.subr.mxu0 0.0
    %135 = vmatpush1.msra.mxu0 0.0
    %136 = vmatprep.subr.mxu0 0.0
    %137 = vmatpush1.msra.mxu0 0.0
    %138 = vmatprep.subr.mxu0 0.0
    %139 = vmatpush1.msra.mxu0 0.0
    %140 = vmatprep.subr.mxu0 0.0
    %141 = vmatpush1.msra.mxu0 0.0
    %142 = vmatprep.subr.mxu0 0.0
    %143 = vmatpush1.msra.mxu0 0.0
    %144 = vmatprep.subr.mxu0 0.0
    %145 = vmatpush1.msra.mxu0 0.0
    %146 = vmatprep.subr.mxu0 0.0
    %147 = vmatpush1.msra.mxu0 0.0
    %148 = vmatprep.subr.mxu0 0.0
    %149 = vmatpush1.msra.mxu0 0.0
    %150 = vmatprep.subr.mxu0 0.0
    %151 = vmatpush1.msra.mxu0 0.0
    %152 = vmatprep.subr.mxu0 0.0
    %153 = vmatpush1.msra.mxu0 0.0
    %154 = vmatprep.subr.mxu0 0.0
    %155 = vmatpush1.msra.mxu0 0.0
    %156 = vmatprep.subr.mxu0 0.0
    %157 = vmatpush1.msra.mxu0 0.0
    %158 = vmatprep.subr.mxu0 0.0
    %159 = vmatpush1.msra.mxu0 0.0
    %160 = vmatprep.subr.mxu0 0.0
    %161 = vmatpush1.msra.mxu0 0.0
    %162 = vmatprep.subr.mxu0 0.0
    %163 = vmatpush1.msra.mxu0 0.0
    %164 = vmatprep.subr.mxu0 0.0
    %165 = vmatpush1.msra.mxu0 0.0
    %166 = vmatprep.subr.mxu0 0.0
    %167 = vmatpush1.msra.mxu0 0.0
    %168 = vmatprep.subr.mxu0 0.0
    %169 = vmatpush1.msra.mxu0 0.0
    %170 = vmatprep.subr.mxu0 0.0
    %171 = vmatpush1.msra.mxu0 0.0
    %172 = vmatprep.mubr.f32.mxu0 0.0
    %173 = vmatmul.mubr.f32.gmra.mrb[0].mxu0 %v61
    %v174 = vpop.f32.mrb[0].mxu0
    %v175 = vadd.f32 %v57, %v174
    %v176 = vpop.f32.mrb[0].mxu0
    %177 = vmatprep.mubr.f32.mxu0 0.0
    %178 = vmatmul.mubr.f32.gmra.mrb[0].mxu0 %v64
    %v179 = vpop.f32.mrb[0].mxu0
    %v180 = vadd.f32 %v57, %v179
    %v181 = vpop.f32.mrb[0].mxu0
    %182 = vmatprep.mubr.f32.mxu0 0.0
    %183 = vmatmul.mubr.f32.gmra.mrb[0].mxu0 %v67
    %v184 = vpop.f32.mrb[0].mxu0
    %v185 = vadd.f32 %v57, %v184
    %v186 = vpop.f32.mrb[0].mxu0
    %187 = vmatprep.mubr.f32.mxu0 0.0
    %188 = vmatmul.mubr.f32.gmra.mrb[0].mxu0 %v70
    %v189 = vpop.f32.mrb[0].mxu0
    %v190 = vadd.f32 %v57, %v189
    %v191 = vpop.f32.mrb[0].mxu0
    %192 = vmatprep.mubr.f32.mxu0 0.0
    %193 = vmatmul.mubr.f32.gmra.mrb[0].mxu0 %v73
    %v194 = vpop.f32.mrb[0].mxu0
    %v195 = vadd.f32 %v57, %v194
    %v196 = vpop.f32.mrb[0].mxu0
    %197 = vmatprep.mubr.f32.mxu0 0.0
    %198 = vmatmul.mubr.f32.gmra.mrb[0].mxu0 %v76
    %v199 = vpop.f32.mrb[0].mxu0
    %v200 = vadd.f32 %v57, %v199
    %v201 = vpop.f32.mrb[0].mxu0
    %202 = vmatprep.mubr.f32.mxu0 0.0
    %203 = vmatmul.mubr.f32.gmra.mrb[0].mxu0 %v79
    %v204 = vpop.f32.mrb[0].mxu0
    %v205 = vadd.f32 %v57, %v204
    %v206 = vpop.f32.mrb[0].mxu0
    %207 = vmatprep.mubr.f32.mxu0 0.0
    %208 = vmatmul.mubr.f32.gmra.mrb[0].mxu0 %v82
    %v209 = vpop.f32.mrb[0].mxu0
    %v210 = vadd.f32 %v57, %v209
    %v211 = vpop.f32.mrb[0].mxu0
    %212 = vmatprep.mubr.f32.mxu0 0.0
    %213 = vmatmul.mubr.f32.gmra.mrb[0].mxu0 %v85
    %v214 = vpop.f32.mrb[0].mxu0
    %v215 = vadd.f32 %v57, %v214
    %v216 = vpop.f32.mrb[0].mxu0
    %217 = vmatprep.mubr.f32.mxu0 0.0
    %218 = vmatmul.mubr.f32.gmra.mrb[0].mxu0 %v88
    %v219 = vpop.f32.mrb[0].mxu0
    %v220 = vadd.f32 %v57, %v219
    %v221 = vpop.f32.mrb[0].mxu0
    %222 = vmatprep.mubr.f32.mxu0 0.0
    %223 = vmatmul.mubr.f32.gmra.mrb[0].mxu0 %v91
    %v224 = vpop.f32.mrb[0].mxu0
    %v225 = vadd.f32 %v57, %v224
    %v226 = vpop.f32.mrb[0].mxu0
    %227 = vmatprep.mubr.f32.mxu0 0.0
    %228 = vmatmul.mubr.f32.gmra.mrb[0].mxu0 %v94
    %v229 = vpop.f32.mrb[0].mxu0
    %v230 = vadd.f32 %v57, %v229
    %v231 = vpop.f32.mrb[0].mxu0
    %232 = vmatprep.mubr.f32.mxu0 0.0
    %233 = vmatmul.mubr.f32.gmra.mrb[0].mxu0 %v97
    %v234 = vpop.f32.mrb[0].mxu0
    %v235 = vadd.f32 %v57, %v234
    %v236 = vpop.f32.mrb[0].mxu0
    %237 = vmatprep.mubr.f32.mxu0 0.0
    %238 = vmatmul.mubr.f32.gmra.mrb[0].mxu0 %v100
    %v239 = vpop.f32.mrb[0].mxu0
    %v240 = vadd.f32 %v57, %v239
    %v241 = vpop.f32.mrb[0].mxu0
    %242 = vmatprep.mubr.f32.mxu0 0.0
    %243 = vmatmul.mubr.f32.gmra.mrb[0].mxu0 %v103
    %v244 = vpop.f32.mrb[0].mxu0
    %v245 = vadd.f32 %v57, %v244
    %v246 = vpop.f32.mrb[0].mxu0
    %247 = vmatprep.mubr.f32.mxu0 0.0
    %248 = vmatmul.mubr.f32.gmra.mrb[0].mxu0 %v106
    %v249 = vpop.f32.mrb[0].mxu0
    %v250 = vadd.f32 %v57, %v249
    %v251 = vpop.f32.mrb[0].mxu0
    %252 = vdwg.mxu0
    %v253 = vmax.f32 %v175, 0.0
    %v254 = vmax.f32 %v180, 0.0
    %v255 = vmax.f32 %v185, 0.0
    %v256 = vmax.f32 %v190, 0.0
    %v257 = vmax.f32 %v195, 0.0
    %v258 = vmax.f32 %v200, 0.0
    %v259 = vmax.f32 %v205, 0.0
    %v260 = vmax.f32 %v210, 0.0
    %v261 = vmax.f32 %v215, 0.0
    %v262 = vmax.f32 %v220, 0.0
    %v263 = vmax.f32 %v225, 0.0
    %v264 = vmax.f32 %v230, 0.0
    %v265 = vmax.f32 %v235, 0.0
    %v266 = vmax.f32 %v240, 0.0
    %v267 = vmax.f32 %v245, 0.0
    %v268 = vmax.f32 %v250, 0.0
    %v269 = vld [vmem:[%s3] sm:$0xff]
    %v270 = vld [vmem:[%s3 + $0x8] sm:$0xff]
    %v271 = vld [vmem:[%s3 + $0x10] sm:$0xff]
    %v272 = vld [vmem:[%s3 + $0x18] sm:$0xff]
    %v273 = vld [vmem:[%s3 + $0x20] sm:$0xff]
    %v274 = vld [vmem:[%s3 + $0x28] sm:$0xff]
    %v275 = vld [vmem:[%s3 + $0x30] sm:$0xff]
    %v276 = vld [vmem:[%s3 + $0x38] sm:$0xff]
    %v277 = vld [vmem:[%s3 + $0x40] sm:$0xff]
    %v278 = vld [vmem:[%s3 + $0x48] sm:$0xff]
    %v279 = vld [vmem:[%s3 + $0x50] sm:$0xff]
    %v280 = vld [vmem:[%s3 + $0x58] sm:$0xff]
    %v281 = vld [vmem:[%s3 + $0x60] sm:$0xff]
    %v282 = vld [vmem:[%s3 + $0x68] sm:$0xff]
    %v283 = vld [vmem:[%s3 + $0x70] sm:$0xff]
    %v284 = vld [vmem:[%s3 + $0x78] sm:$0xff]
    %v285 = vld [vmem:[%s4] sm:$0x1]
    %v287 = vlaneseq
    %v288 = vshrl.u32 %v287, 7
    %v289 = vsub.s32 0, %v288
    %v290 = vrot.slane %v285, %v289
    %292 = vmatprep.subr.mxu0 0.0
    %293 = vmatpush1.msra.mxu0 %v269
    %294 = vmatprep.subr.mxu0 0.0
    %295 = vmatpush1.msra.mxu0 %v270
    %296 = vmatprep.subr.mxu0 0.0
    %297 = vmatpush1.msra.mxu0 %v271
    %298 = vmatprep.subr.mxu0 0.0
    %299 = vmatpush1.msra.mxu0 %v272
    %300 = vmatprep.subr.mxu0 0.0
    %301 = vmatpush1.msra.mxu0 %v273
    %302 = vmatprep.subr.mxu0 0.0
    %303 = vmatpush1.msra.mxu0 %v274
    %304 = vmatprep.subr.mxu0 0.0
    %305 = vmatpush1.msra.mxu0 %v275
    %306 = vmatprep.subr.mxu0 0.0
    %307 = vmatpush1.msra.mxu0 %v276
    %308 = vmatprep.subr.mxu0 0.0
    %309 = vmatpush1.msra.mxu0 %v277
    %310 = vmatprep.subr.mxu0 0.0
    %311 = vmatpush1.msra.mxu0 %v278
    %312 = vmatprep.subr.mxu0 0.0
    %313 = vmatpush1.msra.mxu0 %v279
    %314 = vmatprep.subr.mxu0 0.0
    %315 = vmatpush1.msra.mxu0 %v280
    %316 = vmatprep.subr.mxu0 0.0
    %317 = vmatpush1.msra.mxu0 %v281
    %318 = vmatprep.subr.mxu0 0.0
    %319 = vmatpush1.msra.mxu0 %v282
    %320 = vmatprep.subr.mxu0 0.0
    %321 = vmatpush1.msra.mxu0 %v283
    %322 = vmatprep.subr.mxu0 0.0
    %323 = vmatpush1.msra.mxu0 %v284
    %324 = vmatprep.subr.mxu0 0.0
    %325 = vmatpush1.msra.mxu0 0.0
    %326 = vmatprep.subr.mxu0 0.0
    %327 = vmatpush1.msra.mxu0 0.0
    %328 = vmatprep.subr.mxu0 0.0
    %329 = vmatpush1.msra.mxu0 0.0
    %330 = vmatprep.subr.mxu0 0.0
    %331 = vmatpush1.msra.mxu0 0.0
    %332 = vmatprep.subr.mxu0 0.0
    %333 = vmatpush1.msra.mxu0 0.0
    %334 = vmatprep.subr.mxu0 0.0
    %335 = vmatpush1.msra.mxu0 0.0
    %336 = vmatprep.subr.mxu0 0.0
    %337 = vmatpush1.msra.mxu0 0.0
    %338 = vmatprep.subr.mxu0 0.0
    %339 = vmatpush1.msra.mxu0 0.0
    %340 = vmatprep.subr.mxu0 0.0
    %341 = vmatpush1.msra.mxu0 0.0
    %342 = vmatprep.subr.mxu0 0.0
    %343 = vmatpush1.msra.mxu0 0.0
    %344 = vmatprep.subr.mxu0 0.0
    %345 = vmatpush1.msra.mxu0 0.0
    %346 = vmatprep.subr.mxu0 0.0
    %347 = vmatpush1.msra.mxu0 0.0
    %348 = vmatprep.subr.mxu0 0.0
    %349 = vmatpush1.msra.mxu0 0.0
    %350 = vmatprep.subr.mxu0 0.0
    %351 = vmatpush1.msra.mxu0 0.0
    %352 = vmatprep.subr.mxu0 0.0
    %353 = vmatpush1.msra.mxu0 0.0
    %354 = vmatprep.subr.mxu0 0.0
    %355 = vmatpush1.msra.mxu0 0.0
    %356 = vmatprep.mubr.f32.mxu0 0.0
    %357 = vmatmul.mubr.f32.gmra.mrb[0].mxu0 %v253
    %v358 = vpop.f32.mrb[0].mxu0
    %v359 = vadd.f32 %v290, %v358
    %v360 = vpop.f32.mrb[0].mxu0
    %361 = vmatprep.mubr.f32.mxu0 0.0
    %362 = vmatmul.mubr.f32.gmra.mrb[0].mxu0 %v254
    %v363 = vpop.f32.mrb[0].mxu0
    %v364 = vadd.f32 %v290, %v363
    %v365 = vpop.f32.mrb[0].mxu0
    %366 = vmatprep.mubr.f32.mxu0 0.0
    %367 = vmatmul.mubr.f32.gmra.mrb[0].mxu0 %v255
    %v368 = vpop.f32.mrb[0].mxu0
    %v369 = vadd.f32 %v290, %v368
    %v370 = vpop.f32.mrb[0].mxu0
    %371 = vmatprep.mubr.f32.mxu0 0.0
    %372 = vmatmul.mubr.f32.gmra.mrb[0].mxu0 %v256
    %v373 = vpop.f32.mrb[0].mxu0
    %v374 = vadd.f32 %v290, %v373
    %v375 = vpop.f32.mrb[0].mxu0
    %376 = vmatprep.mubr.f32.mxu0 0.0
    %377 = vmatmul.mubr.f32.gmra.mrb[0].mxu0 %v257
    %v378 = vpop.f32.mrb[0].mxu0
    %v379 = vadd.f32 %v290, %v378
    %v380 = vpop.f32.mrb[0].mxu0
    %381 = vmatprep.mubr.f32.mxu0 0.0
    %382 = vmatmul.mubr.f32.gmra.mrb[0].mxu0 %v258
    %v383 = vpop.f32.mrb[0].mxu0
    %v384 = vadd.f32 %v290, %v383
    %v385 = vpop.f32.mrb[0].mxu0
    %386 = vmatprep.mubr.f32.mxu0 0.0
    %387 = vmatmul.mubr.f32.gmra.mrb[0].mxu0 %v259
    %v388 = vpop.f32.mrb[0].mxu0
    %v389 = vadd.f32 %v290, %v388
    %v390 = vpop.f32.mrb[0].mxu0
    %391 = vmatprep.mubr.f32.mxu0 0.0
    %392 = vmatmul.mubr.f32.gmra.mrb[0].mxu0 %v260
    %v393 = vpop.f32.mrb[0].mxu0
    %v394 = vadd.f32 %v290, %v393
    %v395 = vpop.f32.mrb[0].mxu0
    %396 = vmatprep.mubr.f32.mxu0 0.0
    %397 = vmatmul.mubr.f32.gmra.mrb[0].mxu0 %v261
    %v398 = vpop.f32.mrb[0].mxu0
    %v399 = vadd.f32 %v290, %v398
    %v400 = vpop.f32.mrb[0].mxu0
    %401 = vmatprep.mubr.f32.mxu0 0.0
    %402 = vmatmul.mubr.f32.gmra.mrb[0].mxu0 %v262
    %v403 = vpop.f32.mrb[0].mxu0
    %v404 = vadd.f32 %v290, %v403
    %v405 = vpop.f32.mrb[0].mxu0
    %406 = vmatprep.mubr.f32.mxu0 0.0
    %407 = vmatmul.mubr.f32.gmra.mrb[0].mxu0 %v263
    %v408 = vpop.f32.mrb[0].mxu0
    %v409 = vadd.f32 %v290, %v408
    %v410 = vpop.f32.mrb[0].mxu0
    %411 = vmatprep.mubr.f32.mxu0 0.0
    %412 = vmatmul.mubr.f32.gmra.mrb[0].mxu0 %v264
    %v413 = vpop.f32.mrb[0].mxu0
    %v414 = vadd.f32 %v290, %v413
    %v415 = vpop.f32.mrb[0].mxu0
    %416 = vmatprep.mubr.f32.mxu0 0.0
    %417 = vmatmul.mubr.f32.gmra.mrb[0].mxu0 %v265
    %v418 = vpop.f32.mrb[0].mxu0
    %v419 = vadd.f32 %v290, %v418
    %v420 = vpop.f32.mrb[0].mxu0
    %421 = vmatprep.mubr.f32.mxu0 0.0
    %422 = vmatmul.mubr.f32.gmra.mrb[0].mxu0 %v266
    %v423 = vpop.f32.mrb[0].mxu0
    %v424 = vadd.f32 %v290, %v423
    %v425 = vpop.f32.mrb[0].mxu0
    %426 = vmatprep.mubr.f32.mxu0 0.0
    %427 = vmatmul.mubr.f32.gmra.mrb[0].mxu0 %v267
    %v428 = vpop.f32.mrb[0].mxu0
    %v429 = vadd.f32 %v290, %v428
    %v430 = vpop.f32.mrb[0].mxu0
    %431 = vmatprep.mubr.f32.mxu0 0.0
    %432 = vmatmul.mubr.f32.gmra.mrb[0].mxu0 %v268
    %v433 = vpop.f32.mrb[0].mxu0
    %v434 = vadd.f32 %v290, %v433
    %v435 = vpop.f32.mrb[0].mxu0
    %436 = vdwg.mxu0
    %v437 = vmax.f32 %v359, 0.0
    %v438 = vmax.f32 %v364, 0.0
    %v439 = vmax.f32 %v369, 0.0
    %v440 = vmax.f32 %v374, 0.0
    %v441 = vmax.f32 %v379, 0.0
    %v442 = vmax.f32 %v384, 0.0
    %v443 = vmax.f32 %v389, 0.0
    %v444 = vmax.f32 %v394, 0.0
    %v445 = vmax.f32 %v399, 0.0
    %v446 = vmax.f32 %v404, 0.0
    %v447 = vmax.f32 %v409, 0.0
    %v448 = vmax.f32 %v414, 0.0
    %v449 = vmax.f32 %v419, 0.0
    %v450 = vmax.f32 %v424, 0.0
    %v451 = vmax.f32 %v429, 0.0
    %v452 = vmax.f32 %v434, 0.0
    %v453 = vld [vmem:[%s5] sm:$0x1]
    %s454 = sld [smem:[#allocation2]]
    %v455 = vstv %s454
    %456 = vmatprep.subr.mxu0 0.0
    %457 = vmatpush1.xpose.msra.mxu0 %v437
    %458 = vmatprep.subr.mxu0 0.0
    %459 = vmatpush1.xpose.msra.mxu0 %v438
    %460 = vmatprep.subr.mxu0 0.0
    %461 = vmatpush1.xpose.msra.mxu0 %v439
    %462 = vmatprep.subr.mxu0 0.0
    %463 = vmatpush1.xpose.msra.mxu0 %v440
    %464 = vmatprep.subr.mxu0 0.0
    %465 = vmatpush1.xpose.msra.mxu0 %v441
    %466 = vmatprep.subr.mxu0 0.0
    %467 = vmatpush1.xpose.msra.mxu0 %v442
    %468 = vmatprep.subr.mxu0 0.0
    %469 = vmatpush1.xpose.msra.mxu0 %v443
    %470 = vmatprep.subr.mxu0 0.0
    %471 = vmatpush1.xpose.msra.mxu0 %v444
    %472 = vmatprep.subr.mxu0 0.0
    %473 = vmatpush1.xpose.msra.mxu0 %v445
    %474 = vmatprep.subr.mxu0 0.0
    %475 = vmatpush1.xpose.msra.mxu0 %v446
    %476 = vmatprep.subr.mxu0 0.0
    %477 = vmatpush1.xpose.msra.mxu0 %v447
    %478 = vmatprep.subr.mxu0 0.0
    %479 = vmatpush1.xpose.msra.mxu0 %v448
    %480 = vmatprep.subr.mxu0 0.0
    %481 = vmatpush1.xpose.msra.mxu0 %v449
    %482 = vmatprep.subr.mxu0 0.0
    %483 = vmatpush1.xpose.msra.mxu0 %v450
    %484 = vmatprep.subr.mxu0 0.0
    %485 = vmatpush1.xpose.msra.mxu0 %v451
    %486 = vmatprep.subr.mxu0 0.0
    %487 = vmatpush1.xpose.msra.mxu0 %v452
    %488 = vmatprep.subr.mxu0 0.0
    %489 = vmatpush1.xpose.msra.mxu0 0.0
    %490 = vmatprep.subr.mxu0 0.0
    %491 = vmatpush1.xpose.msra.mxu0 0.0
    %492 = vmatprep.subr.mxu0 0.0
    %493 = vmatpush1.xpose.msra.mxu0 0.0
    %494 = vmatprep.subr.mxu0 0.0
    %495 = vmatpush1.xpose.msra.mxu0 0.0
    %496 = vmatprep.subr.mxu0 0.0
    %497 = vmatpush1.xpose.msra.mxu0 0.0
    %498 = vmatprep.subr.mxu0 0.0
    %499 = vmatpush1.xpose.msra.mxu0 0.0
    %500 = vmatprep.subr.mxu0 0.0
    %501 = vmatpush1.xpose.msra.mxu0 0.0
    %502 = vmatprep.subr.mxu0 0.0
    %503 = vmatpush1.xpose.msra.mxu0 0.0
    %504 = vmatprep.subr.mxu0 0.0
    %505 = vmatpush1.xpose.msra.mxu0 0.0
    %506 = vmatprep.subr.mxu0 0.0
    %507 = vmatpush1.xpose.msra.mxu0 0.0
    %508 = vmatprep.subr.mxu0 0.0
    %509 = vmatpush1.xpose.msra.mxu0 0.0
    %510 = vmatprep.subr.mxu0 0.0
    %511 = vmatpush1.xpose.msra.mxu0 0.0
    %512 = vmatprep.subr.mxu0 0.0
    %513 = vmatpush1.xpose.msra.mxu0 0.0
    %514 = vmatprep.subr.mxu0 0.0
    %515 = vmatpush1.xpose.msra.mxu0 0.0
    %516 = vmatprep.subr.mxu0 0.0
    %517 = vmatpush1.xpose.msra.mxu0 0.0
    %518 = vmatprep.subr.mxu0 0.0
    %519 = vmatpush1.xpose.msra.mxu0 0.0
    %520 = vmatprep.mubr.f32.mxu0 0.0
    %521 = vmatmul.mubr.f32.gmra.mrb[0].mxu0 %v453
    %v522 = vpop.f32.mrb[0].mxu0
    %v523 = vadd.f32 %v455, %v522
    %v524 = vpop.f32.mrb[0].mxu0
    %525 = vdwg.mxu0
    %v526 = vlaneseq
    %v527 = vand.u32 %v526, 127
    %s528 = smul.u32 0, 128
    %s529 = ssub.s32 8, %s528
    %v530 = vstv %s529
    %vm531 = vcmp.lt.s32.totalorder %v527, %v530
    %v532 = vsel %vm531, %v523, 0.0
    %533 = vst [vmem:[#allocation3] sm:$0x1] %v532
    // Predicated region
    $region30: #{tpu_custom_call.1} parent=1 // pred_check
      _
    $region31: #{tpu_custom_call.1} parent=1 // pred_check_branch
      %535 = sbr.rel (0) target = $region33
    $region32: #{tpu_custom_call.1} parent=1 // pred_region
      %s537 = ssub.s32 16, 16
      %538 = vsyncadd [#allocation4], %s537
      %s540 = sshll.u32 [#allocation3], 4
      %s541 = int_to_ptr.vmem [resolvable:$true] %s540
      %543 = dma.vmem_to_hbm [thread:$0]  %s541, 16, %s7, [#allocation4]
    $region33: #{tpu_custom_call.1} parent=1 // pred_fallthru
      _
    // Predicated region
    $region34: #{tpu_custom_call.1} parent=1 // pred_check
      _
    $region35: #{tpu_custom_call.1} parent=1 // pred_check_branch
      %545 = sbr.rel (0) target = $region37
    $region36: #{tpu_custom_call.1} parent=1 // pred_region
      %546 = dma.done [#allocation4], 16
    $region37: #{tpu_custom_call.1} parent=1 // pred_fallthru
      _
    %547 = vsyncpa [#allocation4], 1

</llo_original>
